<compile_context>
chip_gen: v6e
topology: v6e:2x2x1
jax: 0.10.0
libtpu: 0.0.40
codegen_flags: <defaults>
</compile_context>

<pallas_src>
import jax
import jax.numpy as jnp
from jax.experimental import pallas as pl
from jax.experimental.pallas import tpu as pltpu


def _snake_kernel(x_ref, alpha_ref, o_ref):
    # x_ref: (CT, TT) tile, alpha_ref: (CT, 1) tile (resident across b / ti).
    x = x_ref[...].astype(jnp.float32)
    a = alpha_ref[...].astype(jnp.float32)

    # Per-channel constants on the tiny (CT, 1) tile.
    two_a = 2.0 * a
    half_inv = 0.5 / (a + 1e-9)

    # x + sin(a*x)^2 / (a + 1e-9)  ==  x + 0.5/(a+1e-9) * (1 - cos(2*a*x))
    y = x + half_inv * (1.0 - jnp.cos(two_a * x))
    o_ref[...] = y.astype(o_ref.dtype)


def _round_up(n: int, m: int) -> int:
    return ((n + m - 1) // m) * m


def _pick_tile(padded_dim: int, unit: int, max_tile: int) -> int:
    """Largest multiple-of-`unit` divisor of `padded_dim` that is <= max_tile."""
    n = padded_dim // unit
    limit = max(1, max_tile // unit)
    best = 1
    d = 1
    while d <= min(n, limit):
        if n % d == 0:
            best = d
        d += 1
    return best * unit


def snake1d(x: jax.Array, alpha: jax.Array, *,
            max_c_tile: int = 256, max_t_tile: int = 2048) -> jax.Array:
    """x: (B, C, T), alpha: (1, C, 1) -> (B, C, T). Snake activation."""
    B, C, T = x.shape
    assert alpha.shape == (1, C, 1)

    itemsize = jnp.dtype(x.dtype).itemsize
    sub = {1: 32, 2: 16, 4: 8}.get(itemsize, 8)   # sublane packing unit
    lane = 128

    # Align to (sub, 128) so block shapes satisfy the TPU tiling constraint.
    C_pad = _round_up(C, sub)
    T_pad = _round_up(T, lane)

    # Tile sizes: divisors of the padded dims -> every block is full
    # (unmasked lane-dense stores, no partial edge blocks).
    CT = _pick_tile(C_pad, sub, max(max_c_tile, sub))
    TT = _pick_tile(T_pad, lane, max(max_t_tile, lane))

    needs_pad = (C_pad, T_pad) != (C, T)
    if needs_pad:
        xp = jnp.pad(x, ((0, 0), (0, C_pad - C), (0, T_pad - T)))
        ap = jnp.pad(alpha, ((0, 0), (0, C_pad - C), (0, 0)), constant_values=1.0)
    else:
        xp, ap = x, alpha

    grid = (B, C_pad // CT, T_pad // TT)

    yp = pl.pallas_call(
        _snake_kernel,
        out_shape=jax.ShapeDtypeStruct((B, C_pad, T_pad), x.dtype),
        grid_spec=pltpu.PrefetchScalarGridSpec(
            num_scalar_prefetch=0,
            grid=grid,
            in_specs=[
                # x tile: (CT, TT) per (batch, channel-tile, time-tile).
                pl.BlockSpec((pl.Squeezed(), CT, TT), lambda b, ci, ti: (b, ci, ti)),
                # alpha tile: (CT, 1), constant across b and ti -> stays resident.
                pl.BlockSpec((pl.Squeezed(), CT, 1), lambda b, ci, ti: (0, ci, 0)),
            ],
            out_specs=pl.BlockSpec((pl.Squeezed(), CT, TT),
                                   lambda b, ci, ti: (b, ci, ti)),
        ),
        compiler_params=pltpu.CompilerParams(
            dimension_semantics=("parallel", "parallel", "parallel"),
        ),
    )(xp, ap)

    if needs_pad:
        yp = yp[:, :C, :T]
    return yp


def _snake_ref(x, alpha):
    # Same math as the torch.jit.script `snake`.
    return x + (1.0 / (alpha + 1e-9)) * jnp.sin(alpha * x) ** 2


if __name__ == "__main__":
    key = jax.random.PRNGKey(0)

    # Test 1: tiny module-consistent shapes (padded to (8, 128) internally).
    B, C, T = 2, 4, 16
    alpha = jnp.ones((1, C, 1), dtype=jnp.float32)   # Snake1d.__init__: ones(1, C, 1)
    x = jax.random.normal(key, (B, C, T), dtype=jnp.float32)

    y = snake1d(x, alpha)
    jax.block_until_ready(y)
    assert y.shape == x.shape
    assert jnp.allclose(y, _snake_ref(x, alpha), atol=1e-5, rtol=1e-5), \
        "mismatch vs reference (test 1)"

    # Test 2: ragged shapes + non-unit alpha to exercise padding/tiling paths.
    k1, k2 = jax.random.split(key)
    B2, C2, T2 = 1, 12, 300
    alpha2 = 0.5 + jax.random.uniform(k1, (1, C2, 1), dtype=jnp.float32)
    x2 = jax.random.normal(k2, (B2, C2, T2), dtype=jnp.float32)

    y2 = snake1d(x2, alpha2)
    jax.block_until_ready(y2)
    assert y2.shape == x2.shape
    assert jnp.allclose(y2, _snake_ref(x2, alpha2), atol=1e-5, rtol=1e-5), \
        "mismatch vs reference (test 2)"

    print("KERNEL_OK")
</pallas_src>

<mosaic_0001>
module attributes {stable_mosaic.version = 11 : i64} {
  func.func @_snake_kernel(%arg0: i32, %arg1: i32, %arg2: i32, %arg3: memref<1x8x128xf32, #tpu.memory_space<vmem>>, %arg4: memref<1x8x1xf32, #tpu.memory_space<vmem>>, %arg5: memref<1x8x128xf32, #tpu.memory_space<vmem>>) attributes {dimension_semantics = [#tpu.dimension_semantics<parallel>, #tpu.dimension_semantics<parallel>, #tpu.dimension_semantics<parallel>], iteration_bounds = array<i64: 2, 1, 1>, scalar_prefetch = 0 : i64, scratch_operands = 0 : i64, tpu.core_type = #tpu.core_type<tc>, window_params = [{transform_indices = @transform_0, window_bounds = array<i64: 1, 8, 128>}, {transform_indices = @transform_1, window_bounds = array<i64: 1, 8, 1>}, {transform_indices = @transform_2, window_bounds = array<i64: 1, 8, 128>}]} {
    %c0 = arith.constant 0 : index
    %c0_0 = arith.constant 0 : index
    %c0_1 = arith.constant 0 : index
    %0 = vector.load %arg3[%c0, %c0_0, %c0_1] : memref<1x8x128xf32, #tpu.memory_space<vmem>>, vector<1x8x128xf32>
    %1 = vector.shape_cast %0 : vector<1x8x128xf32> to vector<8x128xf32>
    %c0_2 = arith.constant 0 : index
    %c0_3 = arith.constant 0 : index
    %c0_4 = arith.constant 0 : index
    %2 = vector.load %arg4[%c0_2, %c0_3, %c0_4] : memref<1x8x1xf32, #tpu.memory_space<vmem>>, vector<1x8x1xf32>
    %3 = vector.shape_cast %2 : vector<1x8x1xf32> to vector<8x1xf32>
    %cst = arith.constant 2.000000e+00 : f32
    %4 = vector.broadcast %cst : f32 to vector<8x1xf32>
    %5 = arith.mulf %4, %3 : vector<8x1xf32>
    %cst_5 = arith.constant 9.99999971E-10 : f32
    %6 = vector.broadcast %cst_5 : f32 to vector<8x1xf32>
    %7 = arith.addf %3, %6 : vector<8x1xf32>
    %cst_6 = arith.constant 5.000000e-01 : f32
    %8 = vector.broadcast %cst_6 : f32 to vector<8x1xf32>
    %9 = arith.divf %8, %7 : vector<8x1xf32>
    %10 = vector.broadcast %5 : vector<8x1xf32> to vector<8x128xf32>
    %11 = arith.mulf %10, %1 : vector<8x128xf32>
    %12 = math.cos %11 : vector<8x128xf32>
    %cst_7 = arith.constant 1.000000e+00 : f32
    %13 = vector.broadcast %cst_7 : f32 to vector<8x128xf32>
    %14 = arith.subf %13, %12 : vector<8x128xf32>
    %15 = vector.broadcast %9 : vector<8x1xf32> to vector<8x128xf32>
    %16 = arith.mulf %15, %14 : vector<8x128xf32>
    %17 = arith.addf %1, %16 : vector<8x128xf32>
    %c0_8 = arith.constant 0 : index
    %c0_9 = arith.constant 0 : index
    %c0_10 = arith.constant 0 : index
    %18 = vector.load %arg5[%c0_8, %c0_9, %c0_10] : memref<1x8x128xf32, #tpu.memory_space<vmem>>, vector<1x8x128xf32>
    %19 = vector.shape_cast %18 : vector<1x8x128xf32> to vector<8x128xf32>
    %20 = vector.shape_cast %17 : vector<8x128xf32> to vector<1x8x128xf32>
    tpu.vector_store %arg5[%c0_8, %c0_9, %c0_10], %20 {strides = array<i32>} : memref<1x8x128xf32, #tpu.memory_space<vmem>>, vector<1x8x128xf32>,
    return
  }
  func.func @transform_0(%arg0: i32, %arg1: i32, %arg2: i32) -> (i32, i32, i32) {
    %c0_i32 = arith.constant 0 : i32
    return %arg0, %arg1, %arg2 : i32, i32, i32
  }
  func.func @transform_1(%arg0: i32, %arg1: i32, %arg2: i32) -> (i32, i32, i32) {
    %c0_i32 = arith.constant 0 : i32
    %c0_i32_0 = arith.constant 0 : i32
    %c0_i32_1 = arith.constant 0 : i32
    return %c0_i32, %arg1, %c0_i32_0 : i32, i32, i32
  }
  func.func @transform_2(%arg0: i32, %arg1: i32, %arg2: i32) -> (i32, i32, i32) {
    %c0_i32 = arith.constant 0 : i32
    return %arg0, %arg1, %arg2 : i32, i32, i32
  }
}

</mosaic_0001>

<llo_original>
// kernel: tpu_custom_call.1
$region0: #{tpu_custom_call.1}
  #allocation0 [shape = 'u32[]', space=smem, size = 0x4, offset = 0x4, fixed_abs, tag = 'smem constant byte address 0x4 - core index']
  #allocation1 [shape = 'u32[144,128]{1,0:T(1,128)}', space=vmem, size = 0x12000, scoped, tag = 'internal scratch']
  %s0 = inlined_call_operand.hbm [shape: f32[2,8,128], index: 0, kind: input, shape index: {}]
  %s1 = inlined_call_operand.vmem [shape: f32[1,8,1], index: 1, kind: input, shape index: {}]
  %s2 = inlined_call_operand.hbm [shape: f32[2,8,128], index: 2, kind: output, shape index: {}]
  %s3 = sld [smem:[#allocation0]]
  $region45: #{tpu_custom_call.1} parent=0
    _
  %s5 = ssub.s32 1, %s3
  %s6 = scalar_select 0, %s5, %s3
  $region1: #{tpu_custom_call.1} parent=0
    #allocation2 [shape = 'u8[8192]{0}', space=vmem, size = 0x2000, scoped, tag = 'input window, operand 0']
    #allocation3 [shape = 's32[2]{0}', space=sflag, size = 0x8, scoped, tag = 'scoped memory for tpu_custom_call.1']
    #allocation4 [shape = 's32[2]{0}', space=sflag, size = 0x8, scoped, tag = 'scoped memory for tpu_custom_call.1']
    #allocation5 [shape = 'u8[8192]{0}', space=vmem, size = 0x2000, scoped, tag = 'output window, operand 0']
    %7 = vsyncpa [#allocation3], 0
    %s8 = scalar_lea.sflag [#allocation3], 1
    %9 = vsyncpa %s8, 0
    %10 = vsyncpa [#allocation4], 0
    %s11 = scalar_lea.sflag [#allocation4], 1
    %12 = vsyncpa %s11, 0
    loop: start=0, step=1, limit=4
    $region2: #{tpu_custom_call.1} parent=1 // loop_pre_header
      _
    $region3: #{tpu_custom_call.1} parent=1 // loop_header
      %s14 = sphi 0, %s18
      %p15 = scmp.ge.s32.totalorder %s14, 4
      %s21 = sphi 0, %s40
      %s22 = sphi 0, %s36
      %s23 = sphi 0, %s32
      %s24 = sphi 0, %s21
      %s25 = sphi 0, %s22
      %s26 = sphi 0, %s23
      %s27 = sphi 0, %s24
      %s28 = sphi 0, %s25
      %s29 = sphi 0, %s26
      %s47 = sphi 0, %s49
      %s50 = sphi 0, %s47
      %s51 = sphi 0, %s50
      %s67 = sphi 0, %s51
      %s73 = sphi 0, %s75
      %s76 = sphi 0, %s73
      %s77 = sphi 0, %s76
      %s93 = sphi 0, %s77
      %s103 = sphi 0, %s105
      %s106 = sphi 0, %s103
      %s107 = sphi 0, %s106
      %s123 = sphi 0, %s107
    $region4: #{tpu_custom_call.1} parent=1 // loop_header_branch
      %17 = sbr.rel (%p15) target = $region8
    $region5: #{tpu_custom_call.1} parent=1 // loop_body
      %s19 = ssub.s32 %s14, 1
      %s20 = ssub.s32 %s14, 2
      %s30 = sadd.s32 1, %s23
      %p31 = scmp.ge.s32.totalorder %s30, 1
      %s32 = scalar_select %p31, 0, %s30
      %s33 = sadd.s32 1, %s22
      %s34 = scalar_select %p31, %s33, %s22
      %p35 = scmp.ge.s32.totalorder %s34, 1
      %s36 = scalar_select %p35, 0, %s34
      %s37 = sadd.s32 1, %s21
      %s38 = scalar_select %p35, %s37, %s21
      %p39 = scmp.ge.s32.totalorder %s38, 2
      %s40 = scalar_select %p39, 0, %s38
      %s41 = ssub.s32 %s21, %s40
      %s42 = ssub.s32 %s22, %s36
      %s43 = sor.u32 %s41, %s42
      %s44 = ssub.s32 %s23, %s32
      %s45 = sor.u32 %s43, %s44
      %p46 = scmp.eq.s32.totalorder %s45, 0
      %s48 = sadd.s32 %s47, 1
      %s49 = scalar_select %p46, %s47, %s48
      %p52 = pneg %p46
      %p53 = scmp.eq.s32.totalorder %s14, 1
      %p54 = por %p52, %p53
      %p55 = scmp.ne.s32.totalorder %s47, %s50
      %p56 = scmp.eq.s32.totalorder %s14, 0
      %p57 = por %p55, %p56
      %p58 = scmp.ne.s32.totalorder %s47, %s50
      %p59 = scmp.eq.s32.totalorder %s19, 1
      %p60 = por %p58, %p59
      %p61 = scmp.ne.s32.totalorder %s50, %s51
      %p62 = scmp.eq.s32.totalorder %s19, 0
      %p63 = por %p61, %p62
      %p64 = scmp.ne.s32.totalorder %s50, %s51
      %p65 = scmp.eq.s32.totalorder %s20, 1
      %p66 = por %p64, %p65
      %p68 = scmp.ne.s32.totalorder %s51, %s67
      %p69 = scmp.eq.s32.totalorder %s20, 0
      %p70 = por %p68, %p69
      %s71 = ssub.s32 %s22, %s36
      %p72 = scmp.eq.s32.totalorder %s71, 0
      %s74 = sadd.s32 %s73, 1
      %s75 = scalar_select %p72, %s73, %s74
      %p78 = pneg %p72
      %p79 = scmp.eq.s32.totalorder %s14, 1
      %p80 = por %p78, %p79
      %p81 = scmp.ne.s32.totalorder %s73, %s76
      %p82 = scmp.eq.s32.totalorder %s14, 0
      %p83 = por %p81, %p82
      %p84 = scmp.ne.s32.totalorder %s73, %s76
      %p85 = scmp.eq.s32.totalorder %s19, 1
      %p86 = por %p84, %p85
      %p87 = scmp.ne.s32.totalorder %s76, %s77
      %p88 = scmp.eq.s32.totalorder %s19, 0
      %p89 = por %p87, %p88
      %p90 = scmp.ne.s32.totalorder %s76, %s77
      %p91 = scmp.eq.s32.totalorder %s20, 1
      %p92 = por %p90, %p91
      %p94 = scmp.ne.s32.totalorder %s77, %s93
      %p95 = scmp.eq.s32.totalorder %s20, 0
      %p96 = por %p94, %p95
      %s97 = ssub.s32 %s21, %s40
      %s98 = ssub.s32 %s22, %s36
      %s99 = sor.u32 %s97, %s98
      %s100 = ssub.s32 %s23, %s32
      %s101 = sor.u32 %s99, %s100
      %p102 = scmp.eq.s32.totalorder %s101, 0
      %s104 = sadd.s32 %s103, 1
      %s105 = scalar_select %p102, %s103, %s104
      %p108 = pneg %p102
      %p109 = scmp.eq.s32.totalorder %s14, 1
      %p110 = por %p108, %p109
      %p111 = scmp.ne.s32.totalorder %s103, %s106
      %p112 = scmp.eq.s32.totalorder %s14, 0
      %p113 = por %p111, %p112
      %p114 = scmp.ne.s32.totalorder %s103, %s106
      %p115 = scmp.eq.s32.totalorder %s19, 1
      %p116 = por %p114, %p115
      %p117 = scmp.ne.s32.totalorder %s106, %s107
      %p118 = scmp.eq.s32.totalorder %s19, 0
      %p119 = por %p117, %p118
      %p120 = scmp.ne.s32.totalorder %s106, %s107
      %p121 = scmp.eq.s32.totalorder %s20, 1
      %p122 = por %p120, %p121
      %p124 = scmp.ne.s32.totalorder %s107, %s123
      %p125 = scmp.eq.s32.totalorder %s20, 0
      %p126 = por %p124, %p125
      %p127 = scmp.le.s32.totalorder 1, %s14
      %p128 = scmp.lt.s32.totalorder %s14, 3
      %p129 = pnand %p127, %p128
      %p130 = pneg %p129
      // Predicated region
      $region9: #{tpu_custom_call.1} parent=5 // pred_check
        _
      $region10: #{tpu_custom_call.1} parent=5 // pred_check_branch
        %132 = sbr.rel (%p129) target = $region12
      $region11: #{tpu_custom_call.1} parent=5 // pred_region
        %s133 = ssub.s32 %s14, 1
        // Predicated region
        $region13: #{tpu_custom_call.1} parent=11 // pred_check
          %p134 = pneg %p89
        $region14: #{tpu_custom_call.1} parent=11 // pred_check_branch
          %136 = sbr.rel (%p134) target = $region16
        $region15: #{tpu_custom_call.1} parent=11 // pred_region
          %p137 = scmp.lt.s32.totalorder %s25, 0
          %s138 = scalar_select %p137, %s25, 0
          %s139 = smul.addr %s138, 8
          %s140 = scalar_lea.vmem %s1, %s139
        $region16: #{tpu_custom_call.1} parent=11 // pred_fallthru
          _
      $region12: #{tpu_custom_call.1} parent=5 // pred_fallthru
        _
      %p141 = scmp.lt.s32.totalorder %s14, 2
      // Predicated region
      $region17: #{tpu_custom_call.1} parent=5 // pred_check
        %p142 = pneg %p141
      $region18: #{tpu_custom_call.1} parent=5 // pred_check_branch
        %144 = sbr.rel (%p142) target = $region20
      $region19: #{tpu_custom_call.1} parent=5 // pred_region
        // Predicated region
        $region21: #{tpu_custom_call.1} parent=19 // pred_check
          %p145 = pneg %p57
        $region22: #{tpu_custom_call.1} parent=19 // pred_check_branch
          %147 = sbr.rel (%p145) target = $region24
        $region23: #{tpu_custom_call.1} parent=19 // pred_region
          %s148 = sand.u32 %s47, 1
          %s149 = scalar_lea.sflag [#allocation3], %s148
          %s150 = sand.u32 %s47, 1
          %s151 = smul.addr %s150, 8
          %s152 = scalar_lea.vmem [#allocation2], %s151
          %s154 = ssub.s32 128, 128
          %155 = vsyncadd %s149, %s154
          %s156 = sadd.s32 %s23, %s22
          %s157 = sadd.s32 %s156, %s21
          %s158 = smul.addr %s157, 128
          %s159 = scalar_lea.hbm %s0, %s158
          %s161 = sshll.u32 %s152, 4
          %s162 = int_to_ptr.vmem [resolvable:$true] %s161
          %164 = dma.hbm_to_vmem [thread:$0]  %s159, 128, %s162, %s149
        $region24: #{tpu_custom_call.1} parent=19 // pred_fallthru
          _
      $region20: #{tpu_custom_call.1} parent=5 // pred_fallthru
        _
      %p165 = scmp.le.s32.totalorder 1, %s14
      %p166 = scmp.lt.s32.totalorder %s14, 3
      %p167 = pnand %p165, %p166
      %p168 = pneg %p167
      // Predicated region
      $region25: #{tpu_custom_call.1} parent=5 // pred_check
        _
      $region26: #{tpu_custom_call.1} parent=5 // pred_check_branch
        %170 = sbr.rel (%p167) target = $region28
      $region27: #{tpu_custom_call.1} parent=5 // pred_region
        %s171 = ssub.s32 %s14, 1
        %s172 = sand.u32 %s50, 1
        %s173 = scalar_lea.sflag [#allocation3], %s172
        %s174 = sand.u32 %s50, 1
        %s175 = smul.addr %s174, 8
        %s176 = scalar_lea.vmem [#allocation2], %s175
        // Predicated region
        $region29: #{tpu_custom_call.1} parent=27 // pred_check
          %p177 = pneg %p63
        $region30: #{tpu_custom_call.1} parent=27 // pred_check_branch
          %179 = sbr.rel (%p177) target = $region32
        $region31: #{tpu_custom_call.1} parent=27 // pred_region
          %180 = dma.done %s173, 128
        $region32: #{tpu_custom_call.1} parent=27 // pred_fallthru
          _
        %s181 = sand.u32 %s50, 1
        %s182 = scalar_lea.sflag [#allocation3], %s181
        %s183 = sand.u32 %s50, 1
        %s184 = smul.addr %s183, 8
        %s185 = scalar_lea.vmem [#allocation2], %s184
        %p186 = pneg %p63
        %p187 = pneg %p60
        %p188 = scmp.lt.s32.totalorder %s25, 0
        %s189 = scalar_select %p188, %s25, 0
        %s190 = smul.addr %s189, 8
        %s191 = scalar_lea.vmem %s1, %s190
        %p192 = pneg %p89
        %p193 = pneg %p86
        %p194 = pneg %p119
        %p195 = pneg %p116
        %s196 = sand.u32 %s106, 1
        %s197 = scalar_lea.sflag [#allocation4], %s196
        %s198 = sand.u32 %s106, 1
        %s199 = smul.addr %s198, 8
        %s200 = scalar_lea.vmem [#allocation5], %s199
        %p201 = scmp.lt.s32.totalorder %s25, 0
        %s202 = scalar_select %p201, %s25, 0
        %s203 = smul.addr %s202, 8
        %s204 = scalar_lea.vmem %s1, %s203
        %v205 = vld [vmem:[%s176] sm:$0xff]
        %v206 = vld [vmem:[%s204] sm:$0xff]
        %v207 = vmul.f32 %v206, 2.0
        %v208 = vadd.f32 %v206, 1e-09
        %v209 = vrcp.pop %v208
        %v210 = vmul.f32 0.5, %v209
        %212 = vset.pattern.permute.xlu0 0
        %213 = vperm.xlu0 %212, %v207
        %v214 = vpop.permute.xlu0 %213
        %v216 = vmul.f32 %v214, %v205
        %v217 = vand.u32 2147483647, %v216
        %vm218 = vcmp.le.f32.partialorder %v217, 0.7853982
        %vm219 = vcmp.lt.s32.totalorder %v216, 0
        %v220 = vand.u32 %v216, 2139095040
        %v221 = vshrl.u32 %v220, 23
        %v222 = vsub.s32 %v221, 127
        %v223 = vand.u32 2147483647, %v216
        %v224 = vand.u32 %v223, 8388607
        %v225 = vor.u32 %v224, 8388608
        %v226 = vsub.s32 0, %v225
        %v227 = vadd.s32 %v222, 1
        %vm228 = vcmp.gt.s32.totalorder %v227, 0
        %v229 = vsel %vm228, %v227, 0
        %v230 = vshrl.u32 %v229, 5
        %v231 = vand.u32 %v229, 31
        %v232 = vsub.s32 32, %v231
        %v233 = vshrl.u32 683565275, %v232
        %v234 = vshll.u32 683565275, %v231
        %v235 = vshrl.u32 2475754826, %v232
        %v236 = vor.u32 %v234, %v235
        %v237 = vshll.u32 2475754826, %v231
        %v238 = vshrl.u32 2131351028, %v232
        %v239 = vor.u32 %v237, %v238
        %v240 = vshll.u32 2131351028, %v231
        %v241 = vshrl.u32 2102212464, %v232
        %v242 = vor.u32 %v240, %v241
        %v243 = vshll.u32 2102212464, %v231
        %v244 = vshrl.u32 920167782, %v232
        %v245 = vor.u32 %v243, %v244
        %v246 = vshll.u32 920167782, %v231
        %v247 = vshrl.u32 1326507024, %v232
        %v248 = vor.u32 %v246, %v247
        %vm249 = vcmp.lt.s32.totalorder %v230, 1
        %vm250 = vcmp.lt.s32.totalorder %v230, 2
        %vm251 = vcmp.lt.s32.totalorder %v230, 3
        %vm252 = vcmp.lt.s32.totalorder %v230, 4
        %v253 = vsel %vm249, %v233, %v236
        %v254 = vsel %vm252, %v242, 2102212464
        %v255 = vsel %vm251, %v239, %v254
        %v256 = vsel %vm250, %v253, %v255
        %v257 = vsel %vm249, %v236, %v239
        %v258 = vsel %vm252, %v245, 920167782
        %v259 = vsel %vm251, %v242, %v258
        %v260 = vsel %vm250, %v257, %v259
        %v261 = vsel %vm249, %v239, %v242
        %v262 = vsel %vm252, %v248, 1326507024
        %v263 = vsel %vm251, %v245, %v262
        %v264 = vsel %vm250, %v261, %v263
        %v265 = vshll.u32 %v225, 8
        %v266 = vmul.u32.u64.compose %v265, %v264
        %v267 = vextract.low.u32 %v266
        %v268 = vextract.high.u32 %v266
        %v269 = vmul.u32.u64.compose %v265, %v260
        %v270 = vextract.low.u32 %v269
        %v271 = vextract.high.u32 %v269
        %v272 = vmul.u32 %v265, %v256
        %v273 = vadd.s32 %v268, %v270
        %vm274 = vc.u32 %v268, %v270
        %v275 = vadd.s32 %v271, 1
        %v276 = vsel %vm274, %v275, %v271
        %v277 = vadd.s32 %v272, %v276
        %v278 = vadd.s32 %v277, 536870912
        %v279 = vshrl.u32 %v278, 30
        %v280 = vshll.u32 %v279, 30
        %v281 = vsub.s32 %v277, %v280
        %vm282 = vcmp.lt.s32.totalorder %v281, 0
        %v283 = vsub.s32 0, %v281
        %v284 = vsel %vm282, %v283, %v281
        %v285 = vclz %v284
        %v286 = vsub.s32 %v285, 2
        %vm287 = vcmp.gt.s32.totalorder 0, %v286
        %v288 = vsel %vm287, 0, %v286
        %v289 = vsub.s32 32, %v288
        %v290 = vshll.u32 %v281, %v288
        %v291 = vshrl.u32 %v273, %v289
        %v292 = vor.u32 %v290, %v291
        %v293 = vsub.s32 4294967266, %v288
        %v294 = vadd.s32 %v293, 127
        %v295 = vshll.u32 %v294, 23
        %v296 = vor.u32 4788187, %v295
        %v297 = vand.u32 2147483647, %v296
        %v299 = vcvt.s32.f32 %v292
        %v300 = vmul.f32 %v299, %v297
        %v301 = vxor.u32 %v300, 2147483648
        %v302 = vsel %vm219, %v301, %v300
        %v303 = vsub.s32 4, %v279
        %v304 = vsel %vm219, %v303, %v279
        %v305 = vsel %vm218, %v216, %v302
        %v306 = vsel %vm218, 0, %v304
        %v307 = vcosq.f32.pop %v305
        %v308 = vsinq.f32.pop %v305
        %vm309 = vweird.f32 %v216
        %v310 = vand.u32 %v306, 3
        %vm311 = vcmp.lt.s32.totalorder %v310, 2
        %vm312 = vcmp.eq.s32.totalorder %v310, 0
        %v313 = vxor.u32 %v308, 2147483648
        %v314 = vsel %vm312, %v307, %v313
        %vm315 = vcmp.eq.s32.totalorder %v310, 2
        %v316 = vxor.u32 %v307, 2147483648
        %v317 = vsel %vm315, %v316, %v308
        %v318 = vsel %vm311, %v314, %v317
        %v319 = vsel %vm309, nan, %v318
        %v320 = vsub.f32 1.0, %v319
        %322 = vset.pattern.permute.xlu0 0
        %323 = vperm.xlu0 %322, %v210
        %v324 = vpop.permute.xlu0 %323
        %v326 = vmul.f32 %v324, %v320
        %v327 = vadd.f32 %v205, %v326
        %328 = vst [vmem:[%s200] sm:$0xff] %v327
        %s329 = sand.u32 %s106, 1
        %s330 = scalar_lea.sflag [#allocation4], %s329
        %s331 = sand.u32 %s106, 1
        %s332 = smul.addr %s331, 8
        %s333 = scalar_lea.vmem [#allocation5], %s332
        // Predicated region
        $region33: #{tpu_custom_call.1} parent=27 // pred_check
          %p334 = pneg %p116
        $region34: #{tpu_custom_call.1} parent=27 // pred_check_branch
          %336 = sbr.rel (%p334) target = $region36
        $region35: #{tpu_custom_call.1} parent=27 // pred_region
          %s338 = ssub.s32 128, 128
          %339 = vsyncadd %s330, %s338
          %s340 = sadd.s32 %s26, %s25
          %s341 = sadd.s32 %s340, %s24
          %s342 = smul.addr %s341, 128
          %s343 = scalar_lea.hbm %s2, %s342
          %s345 = sshll.u32 %s333, 4
          %s346 = int_to_ptr.vmem [resolvable:$true] %s345
          %348 = dma.vmem_to_hbm [thread:$0]  %s346, 128, %s343, %s330
        $region36: #{tpu_custom_call.1} parent=27 // pred_fallthru
          _
      $region28: #{tpu_custom_call.1} parent=5 // pred_fallthru
        _
      %p349 = scmp.le.s32.totalorder 2, %s14
      // Predicated region
      $region37: #{tpu_custom_call.1} parent=5 // pred_check
        %p350 = pneg %p349
      $region38: #{tpu_custom_call.1} parent=5 // pred_check_branch
        %352 = sbr.rel (%p350) target = $region40
      $region39: #{tpu_custom_call.1} parent=5 // pred_region
        %s353 = ssub.s32 %s14, 2
        // Predicated region
        $region41: #{tpu_custom_call.1} parent=39 // pred_check
          %p354 = pneg %p122
        $region42: #{tpu_custom_call.1} parent=39 // pred_check_branch
          %356 = sbr.rel (%p354) target = $region44
        $region43: #{tpu_custom_call.1} parent=39 // pred_region
          %s357 = sand.u32 %s107, 1
          %s358 = scalar_lea.sflag [#allocation4], %s357
          %s359 = sand.u32 %s107, 1
          %s360 = smul.addr %s359, 8
          %s361 = scalar_lea.vmem [#allocation5], %s360
          %362 = dma.done %s358, 128
        $region44: #{tpu_custom_call.1} parent=39 // pred_fallthru
          _
      $region40: #{tpu_custom_call.1} parent=5 // pred_fallthru
        _
    $region6: #{tpu_custom_call.1} parent=1 // loop_footer
      %s18 = sadd.s32 1, %s14
    $region7: #{tpu_custom_call.1} parent=1 // loop_footer_branch
      %13 = sbr.rel target = $region3
    $region8: #{tpu_custom_call.1} parent=1 // loop_exit
      _
    %363 = vsyncpa [#allocation3], 1
    %s364 = scalar_lea.sflag [#allocation3], 1
    %365 = vsyncpa %s364, 1
    %366 = vsyncpa [#allocation4], 1
    %s367 = scalar_lea.sflag [#allocation4], 1
    %368 = vsyncpa %s367, 1

</llo_original>
